<compile_context>
chip_gen: v5e
topology: v5e:2x2
jax: 0.10.0
libtpu: 0.0.40
codegen_flags: <defaults>
</compile_context>

<pallas_src>
import functools
import math

import numpy as np
import jax
import jax.numpy as jnp
from jax.experimental import pallas as pl
from jax.experimental.pallas import tpu as pltpu


# ----------------------------------------------------------------------
# Pallas kernel:  out(Cout, tile) = act( W(Cout,K) @ x(K,tile) + shift(Cout,1) )
# ----------------------------------------------------------------------
def _convblock_kernel(w_ref, x_ref, sh_ref, alpha_ref, o_ref, *, act):
    z = jnp.dot(w_ref[...], x_ref[...], preferred_element_type=jnp.float32)
    z = z + sh_ref[...]                       # folded conv-bias + BN shift (f32)
    if act == "prelu":
        a = alpha_ref[0]                      # runtime PReLU weight (SMEM scalar)
        z = jnp.where(z >= 0.0, z, a * z)
    elif act == "tanh":
        z = jnp.tanh(z)
    o_ref[...] = z.astype(o_ref.dtype)        # cast only at the final store


def conv_block(x, params, *, tile_want=2048, min_total_steps=8,
               mxu_dtype=jnp.bfloat16, out_dtype=jnp.float32):
    """x: (B, Cin, T, F) f32 NCHW  ->  (B, Cout, T_out, F_out) out_dtype."""
    W2 = params["W2"]                         # (Cout, K) bf16, BN scale pre-folded
    if W2.dtype != mxu_dtype:
        W2 = W2.astype(mxu_dtype)
    shift = params["shift"]                   # (Cout, 1) f32
    alpha = params["alpha"]                   # (1,) f32
    kh, kw = params["kernel"]
    sh, sw = params["stride"]
    ph, pw = params["padding"]
    act = params["act"]

    B, Cin, T, F = x.shape
    Cout, K = W2.shape
    T_out = (T + 2 * ph - kh) // sh + 1
    F_out = (F + 2 * pw - kw) // sw + 1
    N_sp = T_out * F_out                      # samples per batch (lane axis)

    # Fused im2col: one XLA op writes the (B, K, T_out, F_out) patch slab once,
    # channel ordering = c*kh*kw + ih*kw + iw (matches W2's K layout).
    xb = x if x.dtype == mxu_dtype else x.astype(mxu_dtype)
    patches = jax.lax.conv_general_dilated_patches(
        xb, filter_shape=(kh, kw), window_strides=(sh, sw),
        padding=[(ph, ph), (pw, pw)],
        dimension_numbers=("NCHW", "OIHW", "NCHW"))
    xt = patches.reshape(B, K, N_sp)          # free reshape (trailing dims merged)

    # Lane tile: as large as possible, but keep >= min_total_steps grid steps so
    # both v7x TensorCores get >= 4 pipelined steps each (>=4 total on v5e/v6e).
    steps_per_b = max(1, -(-min_total_steps // B))
    tile_cap = max(128, ((-(-N_sp // steps_per_b) + 127) // 128) * 128)
    n_sp_pad = ((N_sp + 127) // 128) * 128
    tile = min(tile_want, tile_cap, n_sp_pad)
    grid = (B, pl.cdiv(N_sp, tile))

    cost = pl.CostEstimate(
        flops=2 * B * Cout * K * N_sp,
        transcendentals=(B * Cout * N_sp if act == "tanh" else 0),
        bytes_accessed=int(xt.size * xt.dtype.itemsize
                           + W2.size * W2.dtype.itemsize
                           + B * Cout * N_sp * jnp.dtype(out_dtype).itemsize))

    out = pl.pallas_call(
        functools.partial(_convblock_kernel, act=act),
        out_shape=jax.ShapeDtypeStruct((B, Cout, N_sp), out_dtype),
        grid=grid,
        in_specs=[
            pl.BlockSpec((Cout, K), lambda b, i: (0, 0)),           # fused weight (resident)
            pl.BlockSpec((None, K, tile), lambda b, i: (b, 0, i)),  # patch slab tile
            pl.BlockSpec((Cout, 1), lambda b, i: (0, 0)),           # folded bias/BN shift
            pl.BlockSpec(memory_space=pltpu.MemorySpace.SMEM),      # PReLU alpha scalar
        ],
        out_specs=pl.BlockSpec((None, Cout, tile), lambda b, i: (b, 0, i)),
        compiler_params=pltpu.CompilerParams(
            dimension_semantics=("parallel", "parallel")),
        cost_estimate=cost,
    )(W2, xt, shift, alpha)

    # Final layout: only a free trailing-dim split remains (no transpose).
    return out.reshape(B, Cout, T_out, F_out)


# ----------------------------------------------------------------------
# Parameter init (PyTorch-style), with BN(eval) folded into weight / shift
# ----------------------------------------------------------------------
def init_convblock(key, in_ch, out_ch, kernel, stride, padding,
                   groups=1, use_deconv=False, is_last=False, eps=1e-5):
    if use_deconv:
        raise NotImplementedError  # TODO(synk): ConvTranspose2d path not implemented
    kh, kw = kernel
    cin_g = in_ch // groups
    cout_g = out_ch // groups
    fan_in = cin_g * kh * kw
    bound = 1.0 / math.sqrt(fan_in)
    k1, k2 = jax.random.split(key)
    w = jax.random.uniform(k1, (out_ch, cin_g, kh, kw), jnp.float32, -bound, bound)
    b = jax.random.uniform(k2, (out_ch,), jnp.float32, -bound, bound)

    # BatchNorm2d eval with default running stats (mean=0, var=1, gamma=1, beta=0)
    gamma = np.ones((out_ch,), np.float32)
    beta = np.zeros((out_ch,), np.float32)
    mean = np.zeros((out_ch,), np.float32)
    var = np.ones((out_ch,), np.float32)
    scale = gamma / np.sqrt(var + eps)                     # (Cout,)
    shift = (np.asarray(b) - mean) * scale + beta          # (Cout,)

    # Dense block-diagonal (Cout, Cin*kh*kw) weight with BN scale folded in.
    # K index layout = ci*kh*kw + ih*kw + iw, matching conv_general_dilated_patches.
    wn = np.asarray(w)
    K = in_ch * kh * kw
    W2 = np.zeros((out_ch, K), np.float32)
    for g in range(groups):
        for ol in range(cout_g):
            o = g * cout_g + ol
            for cl in range(cin_g):
                ci = g * cin_g + cl
                W2[o, ci * kh * kw:(ci + 1) * kh * kw] = wn[o, cl].reshape(-1)
    W2 = W2 * scale[:, None]

    return dict(
        w=w, b=b, groups=groups,                              # raw (for reference)
        W2=jnp.asarray(W2, dtype=jnp.bfloat16),               # bf16 at init (no per-call cast)
        shift=jnp.asarray(shift).reshape(out_ch, 1),
        alpha=jnp.full((1,), 0.25, jnp.float32),              # PReLU default init
        kernel=(kh, kw), stride=tuple(stride), padding=tuple(padding),
        act="tanh" if is_last else "prelu",
    )


# ----------------------------------------------------------------------
# Pure-JAX reference (conv -> BN(eval) -> act), for a correctness check
# ----------------------------------------------------------------------
def conv_block_reference(x, params, eps=1e-5):
    sh, sw = params["stride"]
    ph, pw = params["padding"]
    y = jax.lax.conv_general_dilated(
        x, params["w"], window_strides=(sh, sw),
        padding=[(ph, ph), (pw, pw)],
        dimension_numbers=("NCHW", "OIHW", "NCHW"),
        feature_group_count=params["groups"])
    y = y + params["b"].reshape(1, -1, 1, 1)
    y = y / jnp.sqrt(1.0 + eps)                # BN eval, default running stats
    if params["act"] == "prelu":
        y = jnp.where(y >= 0.0, y, params["alpha"][0] * y)
    else:
        y = jnp.tanh(y)
    return y


# ----------------------------------------------------------------------
if __name__ == "__main__":
    key = jax.random.PRNGKey(0)
    kp1, kp2, kx = jax.random.split(key, 3)

    B, Cin, T, F = 2, 4, 16, 64
    x = jax.random.normal(kx, (B, Cin, T, F), jnp.float32)

    # Config 1: CAGCRN-style grouped (1,5) conv, stride (1,2), PReLU, f32 out.
    p1 = init_convblock(kp1, in_ch=Cin, out_ch=16, kernel=(1, 5),
                        stride=(1, 2), padding=(0, 2), groups=2)
    y1 = conv_block(x, p1)
    jax.block_until_ready(y1)
    assert y1.shape == (B, 16, 16, 32), y1.shape
    assert bool(jnp.all(jnp.isfinite(y1)))
    err1 = float(jnp.max(jnp.abs(y1 - conv_block_reference(x, p1))))
    assert err1 < 0.15, err1                   # bf16 MXU inputs, f32 accumulation

    # Config 2: dense 3x3 conv, stride 1, is_last=True (Tanh), bf16 writeback.
    p2 = init_convblock(kp2, in_ch=Cin, out_ch=8, kernel=(3, 3),
                        stride=(1, 1), padding=(1, 1), groups=1, is_last=True)
    y2 = conv_block(x, p2, out_dtype=jnp.bfloat16)
    jax.block_until_ready(y2)
    assert y2.shape == (B, 8, 16, 64), y2.shape
    assert y2.dtype == jnp.bfloat16, y2.dtype
    assert bool(jnp.all(jnp.isfinite(y2.astype(jnp.float32))))
    err2 = float(jnp.max(jnp.abs(y2.astype(jnp.float32) - conv_block_reference(x, p2))))
    assert err2 < 0.15, err2

    print("KERNEL_OK")
</pallas_src>

<mosaic_0001>
module attributes {stable_mosaic.version = 11 : i64} {
  func.func @_convblock_kernel(%arg0: i32, %arg1: i32, %arg2: memref<16x20xbf16, #tpu.memory_space<vmem>>, %arg3: memref<1x20x128xbf16, #tpu.memory_space<vmem>>, %arg4: memref<16x1xf32, #tpu.memory_space<vmem>>, %arg5: memref<1xf32, #tpu.memory_space<smem>>, %arg6: memref<1x16x128xf32, #tpu.memory_space<vmem>>) attributes {dimension_semantics = [#tpu.dimension_semantics<parallel>, #tpu.dimension_semantics<parallel>], iteration_bounds = array<i64: 2, 4>, scalar_prefetch = 0 : i64, scratch_operands = 0 : i64, tpu.core_type = #tpu.core_type<tc>, window_params = [{pipeline_mode = #tpu.pipeline_mode<synchronous>, transform_indices = @transform_0, window_bounds = array<i64: 16, 20>}, {transform_indices = @transform_1, window_bounds = array<i64: 1, 20, 128>}, {pipeline_mode = #tpu.pipeline_mode<synchronous>, transform_indices = @transform_2, window_bounds = array<i64: 16, 1>}, {transform_indices = @transform_3, window_bounds = array<i64: 1>}, {transform_indices = @transform_4, window_bounds = array<i64: 1, 16, 128>}]} {
    %c0 = arith.constant 0 : index
    %c0_0 = arith.constant 0 : index
    %0 = vector.load %arg2[%c0, %c0_0] : memref<16x20xbf16, #tpu.memory_space<vmem>>, vector<16x20xbf16>
    %c0_1 = arith.constant 0 : index
    %c0_2 = arith.constant 0 : index
    %c0_3 = arith.constant 0 : index
    %1 = vector.load %arg3[%c0_1, %c0_2, %c0_3] : memref<1x20x128xbf16, #tpu.memory_space<vmem>>, vector<1x20x128xbf16>
    %2 = vector.shape_cast %1 : vector<1x20x128xbf16> to vector<20x128xbf16>
    %cst = arith.constant dense<0.000000e+00> : vector<16x128xf32>
    %3 = tpu.matmul %0, %2, %cst {dimension_numbers = #tpu.dot_dimension_numbers<[1], [0], [0], [1], [0, 0, 1, 1], [], []>} : vector<16x20xbf16>, vector<20x128xbf16>, vector<16x128xf32> -> vector<16x128xf32>
    %c0_4 = arith.constant 0 : index
    %c0_5 = arith.constant 0 : index
    %4 = vector.load %arg4[%c0_4, %c0_5] : memref<16x1xf32, #tpu.memory_space<vmem>>, vector<16x1xf32>
    %5 = vector.broadcast %4 : vector<16x1xf32> to vector<16x128xf32>
    %6 = arith.addf %3, %5 : vector<16x128xf32>
    %c0_6 = arith.constant 0 : index
    %7 = memref.load %arg5[%c0_6] : memref<1xf32, #tpu.memory_space<smem>>
    %cst_7 = arith.constant 0.000000e+00 : f32
    %8 = vector.broadcast %cst_7 : f32 to vector<16x128xf32>
    %9 = arith.cmpf oge, %6, %8 : vector<16x128xf32>
    %10 = vector.broadcast %7 : f32 to vector<16x128xf32>
    %11 = arith.mulf %10, %6 : vector<16x128xf32>
    %12 = arith.select %9, %6, %11 : vector<16x128xi1>, vector<16x128xf32>
    %c0_8 = arith.constant 0 : index
    %c0_9 = arith.constant 0 : index
    %c0_10 = arith.constant 0 : index
    %13 = vector.load %arg6[%c0_8, %c0_9, %c0_10] : memref<1x16x128xf32, #tpu.memory_space<vmem>>, vector<1x16x128xf32>
    %14 = vector.shape_cast %13 : vector<1x16x128xf32> to vector<16x128xf32>
    %15 = vector.shape_cast %12 : vector<16x128xf32> to vector<1x16x128xf32>
    tpu.vector_store %arg6[%c0_8, %c0_9, %c0_10], %15 {strides = array<i32>} : memref<1x16x128xf32, #tpu.memory_space<vmem>>, vector<1x16x128xf32>,
    return
  }
  func.func @transform_0(%arg0: i32, %arg1: i32) -> (i32, i32) {
    %c0_i32 = arith.constant 0 : i32
    %c0_i32_0 = arith.constant 0 : i32
    %c0_i32_1 = arith.constant 0 : i32
    return %c0_i32, %c0_i32_0 : i32, i32
  }
  func.func @transform_1(%arg0: i32, %arg1: i32) -> (i32, i32, i32) {
    %c0_i32 = arith.constant 0 : i32
    %c0_i32_0 = arith.constant 0 : i32
    return %arg0, %c0_i32, %arg1 : i32, i32, i32
  }
  func.func @transform_2(%arg0: i32, %arg1: i32) -> (i32, i32) {
    %c0_i32 = arith.constant 0 : i32
    %c0_i32_0 = arith.constant 0 : i32
    %c0_i32_1 = arith.constant 0 : i32
    return %c0_i32, %c0_i32_0 : i32, i32
  }
  func.func @transform_3(%arg0: i32, %arg1: i32) -> i32 {
    %c0_i32 = arith.constant 0 : i32
    %c0_i32_0 = arith.constant 0 : i32
    return %c0_i32 : i32
  }
  func.func @transform_4(%arg0: i32, %arg1: i32) -> (i32, i32, i32) {
    %c0_i32 = arith.constant 0 : i32
    %c0_i32_0 = arith.constant 0 : i32
    return %arg0, %c0_i32, %arg1 : i32, i32, i32
  }
}

</mosaic_0001>

<llo_original>
// kernel: tpu_custom_call.1
$region0: #{tpu_custom_call.1}
  #allocation0 [shape = 'u32[]', space=smem, size = 0x4, offset = 0x4, fixed_abs, tag = 'smem constant byte address 0x4 - core index']
  #allocation1 [shape = 'u32[72,128]{1,0:T(1,128)}', space=vmem, size = 0x9000, scoped, tag = 'internal scratch']
  #allocation2 [shape = 'f32[1]{0:T(128)S(6)}', space=smem, size = 0x200, scoped, tag = 'scoped memory for tpu_custom_call.1']
  %s0 = inlined_call_operand.vmem [shape: bf16[16,20], index: 0, kind: input, shape index: {}]
  %s1 = inlined_call_operand.vmem [shape: bf16[2,20,512], index: 1, kind: input, shape index: {}]
  %s2 = inlined_call_operand.vmem [shape: f32[16,1], index: 2, kind: input, shape index: {}]
  %s3 = inlined_call_operand.<no memory space> [shape: f32[1], index: 3, kind: input, shape index: {}]
  %s4 = inlined_call_operand.hbm [shape: f32[2,16,512], index: 4, kind: output, shape index: {}]
  %s5 = sld [smem:[#allocation0]]
  $region90: #{tpu_custom_call.1} parent=0
    _
  %s7 = ssub.s32 1, %s5
  %s8 = scalar_select 0, %s7, %s5
  %9 = sst [smem:[#allocation2]] %s3
  $region1: #{tpu_custom_call.1} parent=0
    #allocation3 [shape = 'u8[12288]{0}', space=vmem, size = 0x3000, scoped, tag = 'input window, operand 1']
    #allocation4 [shape = 'u8[16384]{0}', space=vmem, size = 0x4000, scoped, tag = 'output window, operand 0']
    #allocation5 [shape = 's32[2]{0}', space=sflag, size = 0x8, scoped, tag = 'scoped memory for tpu_custom_call.1']
    %10 = vsyncpa [#allocation5], 0
    %s11 = scalar_lea.sflag [#allocation5], 1
    %12 = vsyncpa %s11, 0
    loop: start=0, step=1, limit=10
    $region2: #{tpu_custom_call.1} parent=1 // loop_pre_header
      _
    $region3: #{tpu_custom_call.1} parent=1 // loop_header
      %s14 = sphi 0, %s18
      %p15 = scmp.ge.s32.totalorder %s14, 10
      %s21 = sphi 0, %s33
      %s22 = sphi 0, %s29
      %s23 = sphi 0, %s21
      %s24 = sphi 0, %s22
      %s25 = sphi 0, %s23
      %s26 = sphi 0, %s24
      %s34 = sphi 0, %s34
      %s36 = sphi 0, %s34
      %s37 = sphi 0, %s36
      %s51 = sphi 0, %s37
      %s59 = sphi 0, %s61
      %s62 = sphi 0, %s59
      %s63 = sphi 0, %s62
      %s79 = sphi 0, %s63
      %s83 = sphi 0, %s83
      %s85 = sphi 0, %s83
      %s86 = sphi 0, %s85
      %s100 = sphi 0, %s86
      %s104 = sphi 0, %s104
      %s106 = sphi 0, %s104
      %s107 = sphi 0, %s106
      %s121 = sphi 0, %s107
      %s129 = sphi 0, %s131
      %s132 = sphi 0, %s129
      %s133 = sphi 0, %s132
      %s149 = sphi 0, %s133
    $region4: #{tpu_custom_call.1} parent=1 // loop_header_branch
      %17 = sbr.rel (%p15) target = $region8
    $region5: #{tpu_custom_call.1} parent=1 // loop_body
      %s19 = ssub.s32 %s14, 1
      %s20 = ssub.s32 %s14, 2
      %s27 = sadd.s32 1, %s22
      %p28 = scmp.ge.s32.totalorder %s27, 4
      %s29 = scalar_select %p28, 0, %s27
      %s30 = sadd.s32 1, %s21
      %s31 = scalar_select %p28, %s30, %s21
      %p32 = scmp.ge.s32.totalorder %s31, 2
      %s33 = scalar_select %p32, 0, %s31
      %s35 = sadd.s32 %s34, 1
      %p38 = scmp.eq.s32.totalorder %s14, 7
      %p39 = scmp.ne.s32.totalorder %s34, %s36
      %p40 = scmp.eq.s32.totalorder %s14, 0
      %p41 = por %p39, %p40
      %p42 = scmp.ne.s32.totalorder %s34, %s36
      %p43 = scmp.eq.s32.totalorder %s19, 7
      %p44 = por %p42, %p43
      %p45 = scmp.ne.s32.totalorder %s36, %s37
      %p46 = scmp.eq.s32.totalorder %s19, 0
      %p47 = por %p45, %p46
      %p48 = scmp.ne.s32.totalorder %s36, %s37
      %p49 = scmp.eq.s32.totalorder %s20, 7
      %p50 = por %p48, %p49
      %p52 = scmp.ne.s32.totalorder %s37, %s51
      %p53 = scmp.eq.s32.totalorder %s20, 0
      %p54 = por %p52, %p53
      %s55 = ssub.s32 %s21, %s33
      %s56 = ssub.s32 %s22, %s29
      %s57 = sor.u32 %s55, %s56
      %p58 = scmp.eq.s32.totalorder %s57, 0
      %s60 = sadd.s32 %s59, 1
      %s61 = scalar_select %p58, %s59, %s60
      %p64 = pneg %p58
      %p65 = scmp.eq.s32.totalorder %s14, 7
      %p66 = por %p64, %p65
      %p67 = scmp.ne.s32.totalorder %s59, %s62
      %p68 = scmp.eq.s32.totalorder %s14, 0
      %p69 = por %p67, %p68
      %p70 = scmp.ne.s32.totalorder %s59, %s62
      %p71 = scmp.eq.s32.totalorder %s19, 7
      %p72 = por %p70, %p71
      %p73 = scmp.ne.s32.totalorder %s62, %s63
      %p74 = scmp.eq.s32.totalorder %s19, 0
      %p75 = por %p73, %p74
      %p76 = scmp.ne.s32.totalorder %s62, %s63
      %p77 = scmp.eq.s32.totalorder %s20, 7
      %p78 = por %p76, %p77
      %p80 = scmp.ne.s32.totalorder %s63, %s79
      %p81 = scmp.eq.s32.totalorder %s20, 0
      %p82 = por %p80, %p81
      %s84 = sadd.s32 %s83, 1
      %p87 = scmp.eq.s32.totalorder %s14, 7
      %p88 = scmp.ne.s32.totalorder %s83, %s85
      %p89 = scmp.eq.s32.totalorder %s14, 0
      %p90 = por %p88, %p89
      %p91 = scmp.ne.s32.totalorder %s83, %s85
      %p92 = scmp.eq.s32.totalorder %s19, 7
      %p93 = por %p91, %p92
      %p94 = scmp.ne.s32.totalorder %s85, %s86
      %p95 = scmp.eq.s32.totalorder %s19, 0
      %p96 = por %p94, %p95
      %p97 = scmp.ne.s32.totalorder %s85, %s86
      %p98 = scmp.eq.s32.totalorder %s20, 7
      %p99 = por %p97, %p98
      %p101 = scmp.ne.s32.totalorder %s86, %s100
      %p102 = scmp.eq.s32.totalorder %s20, 0
      %p103 = por %p101, %p102
      %s105 = sadd.s32 %s104, 1
      %p108 = scmp.eq.s32.totalorder %s14, 7
      %p109 = scmp.ne.s32.totalorder %s104, %s106
      %p110 = scmp.eq.s32.totalorder %s14, 0
      %p111 = por %p109, %p110
      %p112 = scmp.ne.s32.totalorder %s104, %s106
      %p113 = scmp.eq.s32.totalorder %s19, 7
      %p114 = por %p112, %p113
      %p115 = scmp.ne.s32.totalorder %s106, %s107
      %p116 = scmp.eq.s32.totalorder %s19, 0
      %p117 = por %p115, %p116
      %p118 = scmp.ne.s32.totalorder %s106, %s107
      %p119 = scmp.eq.s32.totalorder %s20, 7
      %p120 = por %p118, %p119
      %p122 = scmp.ne.s32.totalorder %s107, %s121
      %p123 = scmp.eq.s32.totalorder %s20, 0
      %p124 = por %p122, %p123
      %s125 = ssub.s32 %s21, %s33
      %s126 = ssub.s32 %s22, %s29
      %s127 = sor.u32 %s125, %s126
      %p128 = scmp.eq.s32.totalorder %s127, 0
      %s130 = sadd.s32 %s129, 1
      %s131 = scalar_select %p128, %s129, %s130
      %p134 = pneg %p128
      %p135 = scmp.eq.s32.totalorder %s14, 7
      %p136 = por %p134, %p135
      %p137 = scmp.ne.s32.totalorder %s129, %s132
      %p138 = scmp.eq.s32.totalorder %s14, 0
      %p139 = por %p137, %p138
      %p140 = scmp.ne.s32.totalorder %s129, %s132
      %p141 = scmp.eq.s32.totalorder %s19, 7
      %p142 = por %p140, %p141
      %p143 = scmp.ne.s32.totalorder %s132, %s133
      %p144 = scmp.eq.s32.totalorder %s19, 0
      %p145 = por %p143, %p144
      %p146 = scmp.ne.s32.totalorder %s132, %s133
      %p147 = scmp.eq.s32.totalorder %s20, 7
      %p148 = por %p146, %p147
      %p150 = scmp.ne.s32.totalorder %s133, %s149
      %p151 = scmp.eq.s32.totalorder %s20, 0
      %p152 = por %p150, %p151
      %p153 = scmp.le.s32.totalorder 1, %s14
      %p154 = scmp.lt.s32.totalorder %s14, 9
      %p155 = pnand %p153, %p154
      %p156 = pneg %p155
      // Predicated region
      $region9: #{tpu_custom_call.1} parent=5 // pred_check
        _
      $region10: #{tpu_custom_call.1} parent=5 // pred_check_branch
        %158 = sbr.rel (%p155) target = $region12
      $region11: #{tpu_custom_call.1} parent=5 // pred_region
        %s159 = ssub.s32 %s14, 1
        // Predicated region
        $region13: #{tpu_custom_call.1} parent=11 // pred_check
          %p160 = pneg %p47
        $region14: #{tpu_custom_call.1} parent=11 // pred_check_branch
          %162 = sbr.rel (%p160) target = $region16
        $region15: #{tpu_custom_call.1} parent=11 // pred_region
          _
        $region16: #{tpu_custom_call.1} parent=11 // pred_fallthru
          _
        // Predicated region
        $region17: #{tpu_custom_call.1} parent=11 // pred_check
          %p163 = pneg %p96
        $region18: #{tpu_custom_call.1} parent=11 // pred_check_branch
          %165 = sbr.rel (%p163) target = $region20
        $region19: #{tpu_custom_call.1} parent=11 // pred_region
          _
        $region20: #{tpu_custom_call.1} parent=11 // pred_fallthru
          _
        // Predicated region
        $region21: #{tpu_custom_call.1} parent=11 // pred_check
          %p166 = pneg %p117
        $region22: #{tpu_custom_call.1} parent=11 // pred_check_branch
          %168 = sbr.rel (%p166) target = $region24
        $region23: #{tpu_custom_call.1} parent=11 // pred_region
          _
        $region24: #{tpu_custom_call.1} parent=11 // pred_fallthru
          _
      $region12: #{tpu_custom_call.1} parent=5 // pred_fallthru
        _
      %p169 = scmp.lt.s32.totalorder %s14, 8
      // Predicated region
      $region25: #{tpu_custom_call.1} parent=5 // pred_check
        %p170 = pneg %p169
      $region26: #{tpu_custom_call.1} parent=5 // pred_check_branch
        %172 = sbr.rel (%p170) target = $region28
      $region27: #{tpu_custom_call.1} parent=5 // pred_region
        // Predicated region
        $region29: #{tpu_custom_call.1} parent=27 // pred_check
          %p173 = pneg %p69
        $region30: #{tpu_custom_call.1} parent=27 // pred_check_branch
          %175 = sbr.rel (%p173) target = $region32
        $region31: #{tpu_custom_call.1} parent=27 // pred_region
          %s176 = sand.u32 %s59, 1
          %s177 = sand.u32 %s59, 1
          %s178 = smul.addr %s177, 12
          %s179 = scalar_lea.vmem [#allocation3], %s178
          %s180 = smul.addr %s21, 12
          %s181 = sadd.s32 %s22, %s180
          %s182 = smul.addr %s181, 4
          %s183 = scalar_lea.vmem %s1, %s182
          // Predicated region
          $region33: #{tpu_custom_call.1} parent=31 // pred_check
            _
          $region34: #{tpu_custom_call.1} parent=31 // pred_check_branch
            %185 = sbr.rel (0) target = $region36
          $region35: #{tpu_custom_call.1} parent=31 // pred_region
            // Predicated region
            $region37: #{tpu_custom_call.1} parent=35 // pred_check
              _
            $region38: #{tpu_custom_call.1} parent=35 // pred_check_branch
              %187 = sbr.rel target = $region40
            $region39: #{tpu_custom_call.1} parent=35 // pred_region
              // Predicated region
              $region52: #{tpu_custom_call.1} parent=39 // pred_check
                _
              $region53: #{tpu_custom_call.1} parent=39 // pred_check_branch
                %207 = sbr.rel (0) target = $region55
              $region54: #{tpu_custom_call.1} parent=39 // pred_region
                loop: start=0, step=1, limit=1
                $region56: #{tpu_custom_call.1} parent=54 // loop_pre_header
                  _
                $region57: #{tpu_custom_call.1} parent=54 // loop_header
                  %s209 = sphi 0, %s213
                  %p210 = scmp.ge.s32.totalorder %s209, 1
                  %s214 = sphi %s183, %s183
                  %s215 = sphi %s179, %s179
                $region58: #{tpu_custom_call.1} parent=54 // loop_header_branch
                  %212 = sbr.rel (%p210) target = $region62
                $region59: #{tpu_custom_call.1} parent=54 // loop_body
                  _
                $region60: #{tpu_custom_call.1} parent=54 // loop_footer
                  %s213 = sadd.s32 1, %s209
                $region61: #{tpu_custom_call.1} parent=54 // loop_footer_branch
                  %208 = sbr.rel target = $region57
                $region62: #{tpu_custom_call.1} parent=54 // loop_exit
                  _
                %s217 = ssub.s32 16, 1
                loop: start=0, step=1, limit=1
                $region63: #{tpu_custom_call.1} parent=54 // loop_pre_header
                  _
                $region64: #{tpu_custom_call.1} parent=54 // loop_header
                  %s219 = sphi 0, %s223
                  %p220 = scmp.ge.s32.totalorder %s219, 1
                  %s224 = sphi %s183, %s183
                  %s225 = sphi %s179, %s179
                $region65: #{tpu_custom_call.1} parent=54 // loop_header_branch
                  %222 = sbr.rel (%p220) target = $region69
                $region66: #{tpu_custom_call.1} parent=54 // loop_body
                  %v226 = vld [vmem:[%s224] sm:%s217]
                  %227 = vst [vmem:[%s225] sm:%s217] %v226
                  %v228 = vld [vmem:[%s224 + $0x10] sm:%s217]
                  %229 = vst [vmem:[%s225 + $0x4] sm:%s217] %v228
                  %v230 = vld [vmem:[%s224 + $0x20] sm:%s217]
                  %231 = vst [vmem:[%s225 + $0x8] sm:%s217] %v230
                $region67: #{tpu_custom_call.1} parent=54 // loop_footer
                  %s223 = sadd.s32 1, %s219
                $region68: #{tpu_custom_call.1} parent=54 // loop_footer_branch
                  %218 = sbr.rel target = $region64
                $region69: #{tpu_custom_call.1} parent=54 // loop_exit
                  _
              $region55: #{tpu_custom_call.1} parent=39 // pred_fallthru
                _
            $region40: #{tpu_custom_call.1} parent=35 // pred_fallthru
              _
            // Predicated region
            $region41: #{tpu_custom_call.1} parent=35 // pred_check
              _
            $region42: #{tpu_custom_call.1} parent=35 // pred_check_branch
              %189 = sbr.rel (0) target = $region44
            $region43: #{tpu_custom_call.1} parent=35 // pred_region
              %s191 = ssub.s32 16, 1
              loop: start=0, step=1, limit=1
              $region45: #{tpu_custom_call.1} parent=43 // loop_pre_header
                _
              $region46: #{tpu_custom_call.1} parent=43 // loop_header
                %s193 = sphi 0, %s197
                %p194 = scmp.ge.s32.totalorder %s193, 1
                %s198 = sphi %s183, %s183
                %s199 = sphi %s179, %s179
              $region47: #{tpu_custom_call.1} parent=43 // loop_header_branch
                %196 = sbr.rel (%p194) target = $region51
              $region48: #{tpu_custom_call.1} parent=43 // loop_body
                %v200 = vld [vmem:[%s198] sm:%s191]
                %201 = vst [vmem:[%s199] sm:%s191] %v200
                %v202 = vld [vmem:[%s198 + $0x10] sm:%s191]
                %203 = vst [vmem:[%s199 + $0x4] sm:%s191] %v202
                %v204 = vld [vmem:[%s198 + $0x20] sm:%s191]
                %205 = vst [vmem:[%s199 + $0x8] sm:%s191] %v204
              $region49: #{tpu_custom_call.1} parent=43 // loop_footer
                %s197 = sadd.s32 1, %s193
              $region50: #{tpu_custom_call.1} parent=43 // loop_footer_branch
                %192 = sbr.rel target = $region46
              $region51: #{tpu_custom_call.1} parent=43 // loop_exit
                _
            $region44: #{tpu_custom_call.1} parent=35 // pred_fallthru
              _
          $region36: #{tpu_custom_call.1} parent=31 // pred_fallthru
            _
          %232 = vnop
        $region32: #{tpu_custom_call.1} parent=27 // pred_fallthru
          _
      $region28: #{tpu_custom_call.1} parent=5 // pred_fallthru
        _
      %p233 = scmp.le.s32.totalorder 1, %s14
      %p234 = scmp.lt.s32.totalorder %s14, 9
      %p235 = pnand %p233, %p234
      %p236 = pneg %p235
      // Predicated region
      $region70: #{tpu_custom_call.1} parent=5 // pred_check
        _
      $region71: #{tpu_custom_call.1} parent=5 // pred_check_branch
        %238 = sbr.rel (%p235) target = $region73
      $region72: #{tpu_custom_call.1} parent=5 // pred_region
        %s239 = ssub.s32 %s14, 1
        %s240 = sand.u32 %s62, 1
        %s241 = sand.u32 %s62, 1
        %s242 = smul.addr %s241, 12
        %s243 = scalar_lea.vmem [#allocation3], %s242
        // Predicated region
        $region74: #{tpu_custom_call.1} parent=72 // pred_check
          %p244 = pneg %p75
        $region75: #{tpu_custom_call.1} parent=72 // pred_check_branch
          %246 = sbr.rel (%p244) target = $region77
        $region76: #{tpu_custom_call.1} parent=72 // pred_region
          _
        $region77: #{tpu_custom_call.1} parent=72 // pred_fallthru
          _
        %p247 = pneg %p47
        %p248 = pneg %p44
        %s249 = sand.u32 %s62, 1
        %s250 = sand.u32 %s62, 1
        %s251 = smul.addr %s250, 12
        %s252 = scalar_lea.vmem [#allocation3], %s251
        %p253 = pneg %p75
        %p254 = pneg %p72
        %p255 = pneg %p96
        %p256 = pneg %p93
        %p257 = pneg %p117
        %p258 = pneg %p114
        %p259 = pneg %p145
        %p260 = pneg %p142
        %s261 = sand.u32 %s132, 1
        %s262 = scalar_lea.sflag [#allocation5], %s261
        %s263 = sand.u32 %s132, 1
        %s264 = smul.addr %s263, 16
        %s265 = scalar_lea.vmem [#allocation4], %s264
        %v267 = vld [vmem:[%s0] sm:$0xf]
        %v268 = vld [vmem:[%s0 + $0x4] sm:$0xf]
        %v269 = vld [vmem:[%s243] sm:$0xf]
        %v270 = vld [vmem:[%s243 + $0x4] sm:$0xf]
        %v271 = vld [vmem:[%s243 + $0x8] sm:$0x3]
        %v272 = vld [vmem:[%s2] sm:$0xff]
        %v273 = vld [vmem:[%s2 + $0x8] sm:$0xff]
        %275 = vset.pattern.permute.xlu0 0
        %276 = vperm.xlu0 %275, %v272
        %v277 = vpop.permute.xlu0 %276
        %280 = vset.pattern.permute.xlu0 0
        %281 = vperm.xlu0 %280, %v273
        %v282 = vpop.permute.xlu0 %281
        %v286 = vunpack.c.l.b16 %v267
        %v287 = vunpack.c.l.b16 %v268
        %v288 = vpack.c.b16 %v287, %v286
        %v292 = vunpack.c.l.b16 %v269
        %v293 = vunpack.c.l.b16 %v270
        %v294 = vunpack.c.l.b16 %v271
        %v295 = vpack.c.b16 %v293, %v292
        %v296 = vpack.c.b16 %v294, %v294
        %vm298 = vcmask 162816
        %v300 = vsel %vm298, %v288, 0
        %vm302 = vcmask 1041408
        %v304 = vsel %vm302, %v296, 0
        %306 = vmatpush.bf16.msra.mxu0 0
        %307 = vmatpush.bf16.msra.mxu0 0
        %308 = vmatpush.bf16.msra.mxu0 0
        %309 = vmatpush.bf16.msra.mxu0 0
        %310 = vmatpush.bf16.msra.mxu0 0
        %311 = vmatpush.bf16.msra.mxu0 0
        %312 = vmatpush.bf16.msra.mxu0 %v304
        %313 = vmatpush.bf16.msra.mxu0 %v295
        %314 = vmatmul.bf16.gmra.mxu0 %v300
        %v315 = vpop.f32.mrf.mxu0
        %v316 = vadd.f32 %v277, %v315
        %v317 = vpop.f32.mrf.mxu0
        %v318 = vadd.f32 %v282, %v317
        %319 = vdwg.mxu0
        %s320 = sld [smem:[#allocation2]]
        %vm321 = vcmp.ge.f32.partialorder %v316, 0.0
        %vm322 = vcmp.ge.f32.partialorder %v318, 0.0
        %v323 = vstv %s320
        %v324 = vmul.f32 %v323, %v316
        %v325 = vmul.f32 %v323, %v318
        %v326 = vsel %vm321, %v316, %v324
        %v327 = vsel %vm322, %v318, %v325
        %328 = vst [vmem:[%s265] sm:$0xff] %v326
        %329 = vst [vmem:[%s265 + $0x8] sm:$0xff] %v327
        %s330 = sand.u32 %s132, 1
        %s331 = scalar_lea.sflag [#allocation5], %s330
        %s332 = sand.u32 %s132, 1
        %s333 = smul.addr %s332, 16
        %s334 = scalar_lea.vmem [#allocation4], %s333
        // Predicated region
        $region78: #{tpu_custom_call.1} parent=72 // pred_check
          %p335 = pneg %p142
        $region79: #{tpu_custom_call.1} parent=72 // pred_check_branch
          %337 = sbr.rel (%p335) target = $region81
        $region80: #{tpu_custom_call.1} parent=72 // pred_region
          %339 = vsyncadd %s331, 0
          %s340 = smul.addr %s23, 8
          %s341 = sadd.s32 %s24, %s340
          %s342 = smul.addr %s341, 8
          %s343 = scalar_lea.hbm %s4, %s342
          %s344 = sshll.u32 %s334, 4
          %s345 = int_to_ptr.vmem [resolvable:$true] %s344
          %s346 = sshll.u32 %s343, 4
          %s347 = int_to_ptr.hbm [resolvable:$true] %s346
          %352 = dma.vmem_to_hbm [thread:$0]  %s345, 256, %s347, %s331, 128, 512, 8
        $region81: #{tpu_custom_call.1} parent=72 // pred_fallthru
          _
      $region73: #{tpu_custom_call.1} parent=5 // pred_fallthru
        _
      %p353 = scmp.le.s32.totalorder 2, %s14
      // Predicated region
      $region82: #{tpu_custom_call.1} parent=5 // pred_check
        %p354 = pneg %p353
      $region83: #{tpu_custom_call.1} parent=5 // pred_check_branch
        %356 = sbr.rel (%p354) target = $region85
      $region84: #{tpu_custom_call.1} parent=5 // pred_region
        %s357 = ssub.s32 %s14, 2
        // Predicated region
        $region86: #{tpu_custom_call.1} parent=84 // pred_check
          %p358 = pneg %p148
        $region87: #{tpu_custom_call.1} parent=84 // pred_check_branch
          %360 = sbr.rel (%p358) target = $region89
        $region88: #{tpu_custom_call.1} parent=84 // pred_region
          %s361 = sand.u32 %s133, 1
          %s362 = scalar_lea.sflag [#allocation5], %s361
          %s363 = sand.u32 %s133, 1
          %s364 = smul.addr %s363, 16
          %s365 = scalar_lea.vmem [#allocation4], %s364
          %367 = dma.done %s362, 256
        $region89: #{tpu_custom_call.1} parent=84 // pred_fallthru
          _
      $region85: #{tpu_custom_call.1} parent=5 // pred_fallthru
        _
    $region6: #{tpu_custom_call.1} parent=1 // loop_footer
      %s18 = sadd.s32 1, %s14
    $region7: #{tpu_custom_call.1} parent=1 // loop_footer_branch
      %13 = sbr.rel target = $region3
    $region8: #{tpu_custom_call.1} parent=1 // loop_exit
      _
    %368 = vsyncpa [#allocation5], 1
    %s369 = scalar_lea.sflag [#allocation5], 1
    %370 = vsyncpa %s369, 1

</llo_original>
